<compile_context>
chip_gen: v5e
topology: v5e:2x2
jax: 0.10.0
libtpu: 0.0.40
codegen_flags: <defaults>
</compile_context>

<pallas_src>
import numpy as np

import jax
import jax.numpy as jnp
from jax.experimental import pallas as pl
from jax.experimental.pallas import tpu as pltpu


def _round_up(x, m):
    return (x + m - 1) // m * m


# ---------------------------------------------------------------------------
# Fused kernel: all heads in one pass.
#   x:   (B, F)              bf16
#   w1:  (F, hidden_pad)     bf16  -- all heads' first-layer weights, stacked
#   b1:  (1, hidden_pad)     f32
#   w2:  (hidden_pad, out_pad) bf16 -- block-diagonal second-layer weights
#   b2:  (1, out_pad)        f32
#   act: (4, out_pad)        f32  -- rows: scale, alpha, beta, gamma
#   o:   (B, out_pad)        f32  -- concatenated head outputs, lane-padded
# ---------------------------------------------------------------------------
def _supernet_kernel(x_ref, w1_ref, b1_ref, w2_ref, b2_ref, act_ref, o_ref):
    x = x_ref[...]

    # Layer 1 for all heads in one bf16 MXU pass (f32 accumulation), ReLU once.
    h = jnp.dot(x, w1_ref[...], preferred_element_type=jnp.float32) + b1_ref[...]
    h = jnp.maximum(h, 0.0)

    # Layer 2 (block-diagonal) -> already-concatenated, lane-padded output.
    # Cast the hidden activations to bf16 so the MXU runs at bf16 rate.
    y = jnp.dot(h.astype(w2_ref.dtype), w2_ref[...],
                preferred_element_type=jnp.float32) + b2_ref[...]

    # Fused activation epilogue: one tanh over the whole tile (EUP slot) plus
    # per-lane FMAs. Constants encode tanh / sigmoid / identity per lane:
    #   tanh lane:     scale=1,   alpha=1,   beta=0,   gamma=0
    #   sigmoid lane:  scale=0.5, alpha=0.5, beta=0.5, gamma=0
    #   identity/pad:  scale=1,   alpha=0,   beta=0,   gamma=1
    scale = act_ref[0:1, :]
    alpha = act_ref[1:2, :]
    beta = act_ref[2:3, :]
    gamma = act_ref[3:4, :]
    t = jnp.tanh(scale * y)            # f32 transcendental (keep off bf16)
    out = alpha * t + beta + gamma * y

    o_ref[...] = out.astype(o_ref.dtype)


# ---------------------------------------------------------------------------
# Parameter construction / packing
# ---------------------------------------------------------------------------
def init_linear(key, fan_in, fan_out):
    """Deterministic init mimicking torch.nn.Linear default (uniform +-1/sqrt(fan_in))."""
    kw, kb = jax.random.split(key)
    bound = 1.0 / jnp.sqrt(jnp.float32(fan_in))
    w = jax.random.uniform(kw, (fan_in, fan_out), jnp.float32, -bound, bound)
    b = jax.random.uniform(kb, (fan_out,), jnp.float32, -bound, bound)
    return w, b


def make_supernet_params(key, features_dim, action_layers, n_nodes=64):
    params = []
    for _adim, _act in action_layers:
        k1, k2, key = jax.random.split(key, 3)
        w1, b1 = init_linear(k1, features_dim, n_nodes)
        w2, b2 = init_linear(k2, n_nodes, _adim)
        params.append((w1, b1, w2, b2))
    return params


def pack_supernet_params(params, action_layers, features_dim, n_nodes):
    """Stack layer-1 weights, block-diagonalize layer-2, build activation lanes.

    Hidden and output widths are padded to multiples of 128 lanes so both
    matmuls and the output store are lane-dense. Padded columns/rows are zero,
    so they contribute nothing to the real outputs. Weights are stored in
    bfloat16 (f32 accumulation in-kernel); biases stay f32.
    """
    n_heads = len(params)
    hidden = n_heads * n_nodes
    hidden_pad = _round_up(hidden, 128)
    a_dims = [a for a, _ in action_layers]
    sum_a = sum(a_dims)
    out_pad = _round_up(sum_a, 128)

    w1 = np.zeros((features_dim, hidden_pad), np.float32)
    b1 = np.zeros((1, hidden_pad), np.float32)
    w2 = np.zeros((hidden_pad, out_pad), np.float32)
    b2 = np.zeros((1, out_pad), np.float32)

    # Per-lane activation constants: out = alpha*tanh(scale*y) + beta + gamma*y
    scale = np.ones((out_pad,), np.float32)
    alpha = np.zeros((out_pad,), np.float32)
    beta = np.zeros((out_pad,), np.float32)
    gamma = np.ones((out_pad,), np.float32)  # identity default (incl. padded lanes)

    col = 0
    for h, ((w1_h, b1_h, w2_h, b2_h), (a_dim, act)) in enumerate(zip(params, action_layers)):
        r0 = h * n_nodes
        w1[:, r0:r0 + n_nodes] = np.asarray(w1_h)
        b1[0, r0:r0 + n_nodes] = np.asarray(b1_h)
        w2[r0:r0 + n_nodes, col:col + a_dim] = np.asarray(w2_h)
        b2[0, col:col + a_dim] = np.asarray(b2_h)

        sl = slice(col, col + a_dim)
        if act == "tanh":
            scale[sl], alpha[sl], beta[sl], gamma[sl] = 1.0, 1.0, 0.0, 0.0
        elif act == "sigmoid":
            # sigmoid(y) = 0.5 * tanh(0.5 * y) + 0.5
            scale[sl], alpha[sl], beta[sl], gamma[sl] = 0.5, 0.5, 0.5, 0.0
        elif act == "identity":
            pass
        else:
            raise ValueError(f"unknown activation {act}")
        col += a_dim

    act_const = np.stack([scale, alpha, beta, gamma], axis=0)

    packed = (
        jnp.asarray(w1, jnp.bfloat16),
        jnp.asarray(b1, jnp.float32),
        jnp.asarray(w2, jnp.bfloat16),
        jnp.asarray(b2, jnp.float32),
        jnp.asarray(act_const, jnp.float32),
    )
    return packed, sum_a


# ---------------------------------------------------------------------------
# Forward
# ---------------------------------------------------------------------------
def supernet_forward(packed, sum_a, x, *, batch_tile=512):
    """torch: th.cat([subnet(x) for subnet in self.subnet_action], dim=1)"""
    w1, b1, w2, b2, act_const = packed
    B, F = x.shape
    hidden_pad = w1.shape[1]
    out_pad = w2.shape[1]

    x = x.astype(jnp.bfloat16)

    operands = (x, w1, b1, w2, b2, act_const)
    out_bytes = B * out_pad * 4
    cost = pl.CostEstimate(
        flops=2 * B * (F * hidden_pad + hidden_pad * out_pad),
        transcendentals=B * out_pad,
        bytes_accessed=sum(int(a.size) * a.dtype.itemsize for a in operands) + out_bytes,
    )

    if B <= batch_tile:
        # Small batch: whole-array VMEM blocks, no grid (grid steps would only
        # add per-step overhead at this size).
        vmem = pl.BlockSpec(memory_space=pltpu.MemorySpace.VMEM)
        y = pl.pallas_call(
            _supernet_kernel,
            out_shape=jax.ShapeDtypeStruct((B, out_pad), jnp.float32),
            in_specs=[vmem] * 6,
            out_specs=vmem,
            cost_estimate=cost,
        )(*operands)
    else:
        # Large batch: 1-D "parallel" grid over batch tiles. Weights / biases /
        # activation constants stay VMEM-resident (index_map -> (0, 0)).
        # On v6e/v5e (single TC) a larger batch_tile (1024-2048) is fine too;
        # raise vmem_limit_bytes via CompilerParams if needed.
        tb = batch_tile
        b_pad = _round_up(B, tb)
        if b_pad != B:
            x = jnp.pad(x, ((0, b_pad - B), (0, 0)))
        y = pl.pallas_call(
            _supernet_kernel,
            out_shape=jax.ShapeDtypeStruct((b_pad, out_pad), jnp.float32),
            grid=(b_pad // tb,),
            in_specs=[
                pl.BlockSpec((tb, F), lambda i: (i, 0)),
                pl.BlockSpec((F, hidden_pad), lambda i: (0, 0)),
                pl.BlockSpec((1, hidden_pad), lambda i: (0, 0)),
                pl.BlockSpec((hidden_pad, out_pad), lambda i: (0, 0)),
                pl.BlockSpec((1, out_pad), lambda i: (0, 0)),
                pl.BlockSpec((4, out_pad), lambda i: (0, 0)),
            ],
            out_specs=pl.BlockSpec((tb, out_pad), lambda i: (i, 0)),
            compiler_params=pltpu.CompilerParams(
                dimension_semantics=("parallel",)),
            cost_estimate=cost,
        )(x, w1, b1, w2, b2, act_const)
        y = y[:B]

    # Slice off the lane padding (layout plumbing outside the kernel).
    return y[:, :sum_a]


def _reference_forward(params, action_layers, x):
    """Per-head reference using the same bf16-operand / f32-accumulation math."""
    outs = []
    xb = x.astype(jnp.bfloat16)
    for (w1, b1, w2, b2), (_adim, act) in zip(params, action_layers):
        h = jnp.dot(xb, w1.astype(jnp.bfloat16),
                    preferred_element_type=jnp.float32) + b1
        h = jnp.maximum(h, 0.0)
        y = jnp.dot(h.astype(jnp.bfloat16), w2.astype(jnp.bfloat16),
                    preferred_element_type=jnp.float32) + b2
        if act == "tanh":
            y = jnp.tanh(y)
        elif act == "sigmoid":
            y = jax.nn.sigmoid(y)
        outs.append(y)
    return jnp.concatenate(outs, axis=1)


if __name__ == "__main__":
    # Small shapes consistent with the module:
    #   features_dim = 32, n_nodes = 64, batch = 2
    #   action_layers ~ [(4, nn.Tanh), (3, nn.Sigmoid)]  (activation as string tag)
    features_dim = 32
    n_nodes = 64
    batch = 2
    action_layers = [(4, "tanh"), (3, "sigmoid")]

    key = jax.random.PRNGKey(0)
    kx, kp = jax.random.split(key)
    x = jax.random.normal(kx, (batch, features_dim), jnp.float32)

    params = make_supernet_params(kp, features_dim, action_layers, n_nodes)
    packed, sum_a = pack_supernet_params(params, action_layers, features_dim, n_nodes)

    out = supernet_forward(packed, sum_a, x)
    out = jax.block_until_ready(out)

    ref = _reference_forward(params, action_layers, x)
    assert out.shape == (batch, sum(a for a, _ in action_layers)), out.shape
    # bf16 matmul operands: compare against the matched bf16 reference with a
    # tolerance that covers accumulation-order differences only.
    assert jnp.allclose(out, ref, atol=1e-2, rtol=1e-2), "mismatch vs reference"

    print("KERNEL_OK")
</pallas_src>

<mosaic_0001>
module attributes {stable_mosaic.version = 11 : i64} {
  func.func @_supernet_kernel(%arg0: memref<2x32xbf16, #tpu.memory_space<vmem>>, %arg1: memref<32x128xbf16, #tpu.memory_space<vmem>>, %arg2: memref<1x128xf32, #tpu.memory_space<vmem>>, %arg3: memref<128x128xbf16, #tpu.memory_space<vmem>>, %arg4: memref<1x128xf32, #tpu.memory_space<vmem>>, %arg5: memref<4x128xf32, #tpu.memory_space<vmem>>, %arg6: memref<2x128xf32, #tpu.memory_space<vmem>>) attributes {dimension_semantics = [], scalar_prefetch = 0 : i64, scratch_operands = 0 : i64, tpu.core_type = #tpu.core_type<tc>} {
    %c0 = arith.constant 0 : index
    %c0_0 = arith.constant 0 : index
    %0 = vector.load %arg0[%c0, %c0_0] : memref<2x32xbf16, #tpu.memory_space<vmem>>, vector<2x32xbf16>
    %c0_1 = arith.constant 0 : index
    %c0_2 = arith.constant 0 : index
    %1 = vector.load %arg1[%c0_1, %c0_2] : memref<32x128xbf16, #tpu.memory_space<vmem>>, vector<32x128xbf16>
    %cst = arith.constant dense<0.000000e+00> : vector<2x128xf32>
    %2 = tpu.matmul %0, %1, %cst {dimension_numbers = #tpu.dot_dimension_numbers<[1], [0], [0], [1], [0, 0, 1, 1], [], []>} : vector<2x32xbf16>, vector<32x128xbf16>, vector<2x128xf32> -> vector<2x128xf32>
    %c0_3 = arith.constant 0 : index
    %c0_4 = arith.constant 0 : index
    %3 = vector.load %arg2[%c0_3, %c0_4] : memref<1x128xf32, #tpu.memory_space<vmem>>, vector<1x128xf32>
    %4 = vector.broadcast %3 : vector<1x128xf32> to vector<2x128xf32>
    %5 = arith.addf %2, %4 : vector<2x128xf32>
    %cst_5 = arith.constant 0.000000e+00 : f32
    %6 = vector.broadcast %cst_5 : f32 to vector<2x128xf32>
    %7 = arith.maximumf %5, %6 : vector<2x128xf32>
    %8 = arith.truncf %7 : vector<2x128xf32> to vector<2x128xbf16>
    %c0_6 = arith.constant 0 : index
    %c0_7 = arith.constant 0 : index
    %9 = vector.load %arg3[%c0_6, %c0_7] : memref<128x128xbf16, #tpu.memory_space<vmem>>, vector<128x128xbf16>
    %cst_8 = arith.constant dense<0.000000e+00> : vector<2x128xf32>
    %10 = tpu.matmul %8, %9, %cst_8 {dimension_numbers = #tpu.dot_dimension_numbers<[1], [0], [0], [1], [0, 0, 1, 1], [], []>} : vector<2x128xbf16>, vector<128x128xbf16>, vector<2x128xf32> -> vector<2x128xf32>
    %c0_9 = arith.constant 0 : index
    %c0_10 = arith.constant 0 : index
    %11 = vector.load %arg4[%c0_9, %c0_10] : memref<1x128xf32, #tpu.memory_space<vmem>>, vector<1x128xf32>
    %12 = vector.broadcast %11 : vector<1x128xf32> to vector<2x128xf32>
    %13 = arith.addf %10, %12 : vector<2x128xf32>
    %c0_11 = arith.constant 0 : index
    %c0_12 = arith.constant 0 : index
    %14 = vector.load %arg5[%c0_11, %c0_12] : memref<4x128xf32, #tpu.memory_space<vmem>>, vector<1x128xf32>
    %c1 = arith.constant 1 : index
    %c0_13 = arith.constant 0 : index
    %15 = vector.load %arg5[%c1, %c0_13] : memref<4x128xf32, #tpu.memory_space<vmem>>, vector<1x128xf32>
    %c2 = arith.constant 2 : index
    %c0_14 = arith.constant 0 : index
    %16 = vector.load %arg5[%c2, %c0_14] : memref<4x128xf32, #tpu.memory_space<vmem>>, vector<1x128xf32>
    %c3 = arith.constant 3 : index
    %c0_15 = arith.constant 0 : index
    %17 = vector.load %arg5[%c3, %c0_15] : memref<4x128xf32, #tpu.memory_space<vmem>>, vector<1x128xf32>
    %18 = vector.broadcast %14 : vector<1x128xf32> to vector<2x128xf32>
    %19 = arith.mulf %18, %13 : vector<2x128xf32>
    %20 = math.tanh %19 : vector<2x128xf32>
    %21 = vector.broadcast %15 : vector<1x128xf32> to vector<2x128xf32>
    %22 = arith.mulf %21, %20 : vector<2x128xf32>
    %23 = vector.broadcast %16 : vector<1x128xf32> to vector<2x128xf32>
    %24 = arith.addf %22, %23 : vector<2x128xf32>
    %25 = vector.broadcast %17 : vector<1x128xf32> to vector<2x128xf32>
    %26 = arith.mulf %25, %13 : vector<2x128xf32>
    %27 = arith.addf %24, %26 : vector<2x128xf32>
    %c0_16 = arith.constant 0 : index
    %c0_17 = arith.constant 0 : index
    %28 = vector.load %arg6[%c0_16, %c0_17] : memref<2x128xf32, #tpu.memory_space<vmem>>, vector<2x128xf32>
    tpu.vector_store %arg6[%c0_16, %c0_17], %27 {strides = array<i32>} : memref<2x128xf32, #tpu.memory_space<vmem>>, vector<2x128xf32>,
    return
  }
}

</mosaic_0001>

<llo_original>
// kernel: tpu_custom_call.1
$region0: #{tpu_custom_call.1}
  #allocation0 [shape = 'u32[]', space=smem, size = 0x4, offset = 0x4, fixed_abs, tag = 'smem constant byte address 0x4 - core index']
  #allocation1 [shape = 'u32[72,128]{1,0:T(1,128)}', space=vmem, size = 0x9000, scoped, tag = 'internal scratch']
  %s0 = inlined_call_operand.hbm [shape: bf16[2,32], index: 0, kind: input, shape index: {}]
  %s1 = inlined_call_operand.hbm [shape: bf16[32,128], index: 1, kind: input, shape index: {}]
  %s2 = inlined_call_operand.hbm [shape: f32[1,128], index: 2, kind: input, shape index: {}]
  %s3 = inlined_call_operand.hbm [shape: bf16[128,128], index: 3, kind: input, shape index: {}]
  %s4 = inlined_call_operand.hbm [shape: f32[1,128], index: 4, kind: input, shape index: {}]
  %s5 = inlined_call_operand.vmem [shape: f32[4,128], index: 5, kind: input, shape index: {}]
  %s6 = inlined_call_operand.hbm [shape: f32[2,128], index: 6, kind: output, shape index: {}]
  %s7 = sld [smem:[#allocation0]]
  $region54: #{tpu_custom_call.1} parent=0
    _
  %s9 = ssub.s32 1, %s7
  %s10 = scalar_select 0, %s9, %s7
  $region1: #{tpu_custom_call.1} parent=0
    #allocation2 [shape = 'u8[512]{0}', space=vmem, size = 0x400, scoped, tag = 'input window, operand 0, single buffered']
    #allocation3 [shape = 's32[1]{0}', space=sflag, size = 0x4, scoped, tag = 'scoped memory for tpu_custom_call.1']
    #allocation4 [shape = 's32[1]{0}', space=sflag, size = 0x4, scoped, tag = 'scoped memory for tpu_custom_call.1']
    #allocation5 [shape = 'u8[8192]{0}', space=vmem, size = 0x2000, scoped, tag = 'input window, operand 1, single buffered']
    #allocation6 [shape = 's32[1]{0}', space=sflag, size = 0x4, scoped, tag = 'scoped memory for tpu_custom_call.1']
    #allocation7 [shape = 'u8[512]{0}', space=vmem, size = 0x400, scoped, tag = 'input window, operand 2, single buffered']
    #allocation8 [shape = 'u8[32768]{0}', space=vmem, size = 0x8000, scoped, tag = 'input window, operand 3, single buffered']
    #allocation9 [shape = 's32[1]{0}', space=sflag, size = 0x4, scoped, tag = 'scoped memory for tpu_custom_call.1']
    #allocation10 [shape = 'u8[512]{0}', space=vmem, size = 0x400, scoped, tag = 'input window, operand 4, single buffered']
    #allocation11 [shape = 'u8[1024]{0}', space=vmem, size = 0x400, scoped, tag = 'output window, operand 0, single buffered']
    %11 = vsyncpa [#allocation3], 0
    %12 = vsyncpa [#allocation6], 0
    %13 = vsyncpa [#allocation9], 0
    %14 = vsyncpa [#allocation4], 0
    // Predicated region
    $region2: #{tpu_custom_call.1} parent=1 // pred_check
      _
    $region3: #{tpu_custom_call.1} parent=1 // pred_check_branch
      %16 = sbr.rel (0) target = $region5
    $region4: #{tpu_custom_call.1} parent=1 // pred_region
      %18 = vsyncadd [#allocation3], 0
      %s20 = sshll.u32 %s0, 4
      %s21 = int_to_ptr.hbm [resolvable:$true] %s20
      %s22 = sshll.u32 [#allocation2], 4
      %s23 = int_to_ptr.vmem [resolvable:$true] %s22
      %25 = dma.hbm_to_vmem [thread:$0]  %s21, 16, %s23, [#allocation3]
    $region5: #{tpu_custom_call.1} parent=1 // pred_fallthru
      _
    // Predicated region
    $region6: #{tpu_custom_call.1} parent=1 // pred_check
      _
    $region7: #{tpu_custom_call.1} parent=1 // pred_check_branch
      %27 = sbr.rel (0) target = $region9
    $region8: #{tpu_custom_call.1} parent=1 // pred_region
      %29 = vsyncadd [#allocation6], 0
      %s30 = sshll.u32 %s1, 4
      %s31 = int_to_ptr.hbm [resolvable:$true] %s30
      %s32 = sshll.u32 [#allocation5], 4
      %s33 = int_to_ptr.vmem [resolvable:$true] %s32
      %38 = dma.hbm_to_vmem [thread:$0]  %s31, 256, %s33, [#allocation6], 64, 64, 4
    $region9: #{tpu_custom_call.1} parent=1 // pred_fallthru
      _
    // Predicated region
    $region10: #{tpu_custom_call.1} parent=1 // pred_check
      _
    $region11: #{tpu_custom_call.1} parent=1 // pred_check_branch
      %40 = sbr.rel (0) target = $region13
    $region12: #{tpu_custom_call.1} parent=1 // pred_region
      %42 = vsyncadd [#allocation6], 0
      %s44 = sshll.u32 %s2, 4
      %s45 = int_to_ptr.hbm [resolvable:$true] %s44
      %s46 = sshll.u32 [#allocation7], 4
      %s47 = int_to_ptr.vmem [resolvable:$true] %s46
      %49 = dma.hbm_to_vmem [thread:$0]  %s45, 16, %s47, [#allocation6]
    $region13: #{tpu_custom_call.1} parent=1 // pred_fallthru
      _
    // Predicated region
    $region14: #{tpu_custom_call.1} parent=1 // pred_check
      _
    $region15: #{tpu_custom_call.1} parent=1 // pred_check_branch
      %51 = sbr.rel (0) target = $region17
    $region16: #{tpu_custom_call.1} parent=1 // pred_region
      %53 = vsyncadd [#allocation9], 0
      %s54 = sshll.u32 %s3, 4
      %s55 = int_to_ptr.hbm [resolvable:$true] %s54
      %s56 = sshll.u32 [#allocation8], 4
      %s57 = int_to_ptr.vmem [resolvable:$true] %s56
      %62 = dma.hbm_to_vmem [thread:$0]  %s55, 1024, %s57, [#allocation9], 64, 64, 4
    $region17: #{tpu_custom_call.1} parent=1 // pred_fallthru
      _
    // Predicated region
    $region18: #{tpu_custom_call.1} parent=1 // pred_check
      _
    $region19: #{tpu_custom_call.1} parent=1 // pred_check_branch
      %64 = sbr.rel (0) target = $region21
    $region20: #{tpu_custom_call.1} parent=1 // pred_region
      %66 = vsyncadd [#allocation9], 0
      %s68 = sshll.u32 %s4, 4
      %s69 = int_to_ptr.hbm [resolvable:$true] %s68
      %s70 = sshll.u32 [#allocation10], 4
      %s71 = int_to_ptr.vmem [resolvable:$true] %s70
      %73 = dma.hbm_to_vmem [thread:$0]  %s69, 16, %s71, [#allocation9]
    $region21: #{tpu_custom_call.1} parent=1 // pred_fallthru
      _
    // Predicated region
    $region22: #{tpu_custom_call.1} parent=1 // pred_check
      _
    $region23: #{tpu_custom_call.1} parent=1 // pred_check_branch
      %75 = sbr.rel (0) target = $region25
    $region24: #{tpu_custom_call.1} parent=1 // pred_region
      _
    $region25: #{tpu_custom_call.1} parent=1 // pred_fallthru
      _
    // Predicated region
    $region26: #{tpu_custom_call.1} parent=1 // pred_check
      _
    $region27: #{tpu_custom_call.1} parent=1 // pred_check_branch
      %77 = sbr.rel (0) target = $region29
    $region28: #{tpu_custom_call.1} parent=1 // pred_region
      %79 = dma.done [#allocation3], 16
    $region29: #{tpu_custom_call.1} parent=1 // pred_fallthru
      _
    // Predicated region
    $region30: #{tpu_custom_call.1} parent=1 // pred_check
      _
    $region31: #{tpu_custom_call.1} parent=1 // pred_check_branch
      %81 = sbr.rel (0) target = $region33
    $region32: #{tpu_custom_call.1} parent=1 // pred_region
      %83 = dma.done [#allocation6], 256
    $region33: #{tpu_custom_call.1} parent=1 // pred_fallthru
      _
    // Predicated region
    $region34: #{tpu_custom_call.1} parent=1 // pred_check
      _
    $region35: #{tpu_custom_call.1} parent=1 // pred_check_branch
      %85 = sbr.rel (0) target = $region37
    $region36: #{tpu_custom_call.1} parent=1 // pred_region
      %87 = dma.done [#allocation6], 16
    $region37: #{tpu_custom_call.1} parent=1 // pred_fallthru
      _
    // Predicated region
    $region38: #{tpu_custom_call.1} parent=1 // pred_check
      _
    $region39: #{tpu_custom_call.1} parent=1 // pred_check_branch
      %89 = sbr.rel (0) target = $region41
    $region40: #{tpu_custom_call.1} parent=1 // pred_region
      %91 = dma.done [#allocation9], 1024
    $region41: #{tpu_custom_call.1} parent=1 // pred_fallthru
      _
    // Predicated region
    $region42: #{tpu_custom_call.1} parent=1 // pred_check
      _
    $region43: #{tpu_custom_call.1} parent=1 // pred_check_branch
      %93 = sbr.rel (0) target = $region45
    $region44: #{tpu_custom_call.1} parent=1 // pred_region
      %95 = dma.done [#allocation9], 16
    $region45: #{tpu_custom_call.1} parent=1 // pred_fallthru
      _
    %v97 = vld [vmem:[#allocation2] sm:$0x1]
    %v98 = vld [vmem:[#allocation5] sm:$0xf]
    %v99 = vld [vmem:[#allocation5 + $0x4] sm:$0xf]
    %v100 = vld [vmem:[#allocation5 + $0x8] sm:$0xf]
    %v101 = vld [vmem:[#allocation5 + $0xc] sm:$0xf]
    %v102 = vld [vmem:[#allocation7] sm:$0x1]
    %v104 = vperm.slane %v102, 0
    %v110 = vunpack.c.l.b16 %v98
    %v111 = vunpack.c.l.b16 %v99
    %v112 = vunpack.c.l.b16 %v100
    %v113 = vunpack.c.l.b16 %v101
    %v114 = vpack.c.b16 %v111, %v110
    %v115 = vpack.c.b16 %v113, %v112
    %vm118 = vcmask 261120
    %v120 = vsel %vm118, %v97, 0
    %122 = vmatpush.bf16.msra.mxu0 0
    %123 = vmatpush.bf16.msra.mxu0 0
    %124 = vmatpush.bf16.msra.mxu0 0
    %125 = vmatpush.bf16.msra.mxu0 0
    %126 = vmatpush.bf16.msra.mxu0 0
    %127 = vmatpush.bf16.msra.mxu0 0
    %128 = vmatpush.bf16.msra.mxu0 %v115
    %129 = vmatpush.bf16.msra.mxu0 %v114
    %130 = vmatmul.bf16.gmra.mxu0 %v120
    %v131 = vpop.f32.mrf.mxu0
    %v132 = vadd.f32 %v104, %v131
    %v133 = vpop.f32.mrf.mxu0
    %134 = vdwg.mxu0
    %v135 = vmax.f32 %v132, 0.0
    %v136 = vpack.c.bf16 %v135, %v135
    %v137 = vld [vmem:[#allocation8] sm:$0xf]
    %v138 = vld [vmem:[#allocation8 + $0x4] sm:$0xf]
    %v139 = vld [vmem:[#allocation8 + $0x8] sm:$0xf]
    %v140 = vld [vmem:[#allocation8 + $0xc] sm:$0xf]
    %v141 = vld [vmem:[#allocation8 + $0x10] sm:$0xf]
    %v142 = vld [vmem:[#allocation8 + $0x14] sm:$0xf]
    %v143 = vld [vmem:[#allocation8 + $0x18] sm:$0xf]
    %v144 = vld [vmem:[#allocation8 + $0x1c] sm:$0xf]
    %v145 = vld [vmem:[#allocation8 + $0x20] sm:$0xf]
    %v146 = vld [vmem:[#allocation8 + $0x24] sm:$0xf]
    %v147 = vld [vmem:[#allocation8 + $0x28] sm:$0xf]
    %v148 = vld [vmem:[#allocation8 + $0x2c] sm:$0xf]
    %v149 = vld [vmem:[#allocation8 + $0x30] sm:$0xf]
    %v150 = vld [vmem:[#allocation8 + $0x34] sm:$0xf]
    %v151 = vld [vmem:[#allocation8 + $0x38] sm:$0xf]
    %v152 = vld [vmem:[#allocation8 + $0x3c] sm:$0xf]
    %v153 = vld [vmem:[#allocation10] sm:$0x1]
    %v155 = vperm.slane %v153, 0
    %v173 = vunpack.c.l.b16 %v137
    %v174 = vunpack.c.l.b16 %v138
    %v175 = vunpack.c.l.b16 %v139
    %v176 = vunpack.c.l.b16 %v140
    %v177 = vunpack.c.l.b16 %v141
    %v178 = vunpack.c.l.b16 %v142
    %v179 = vunpack.c.l.b16 %v143
    %v180 = vunpack.c.l.b16 %v144
    %v181 = vunpack.c.l.b16 %v145
    %v182 = vunpack.c.l.b16 %v146
    %v183 = vunpack.c.l.b16 %v147
    %v184 = vunpack.c.l.b16 %v148
    %v185 = vunpack.c.l.b16 %v149
    %v186 = vunpack.c.l.b16 %v150
    %v187 = vunpack.c.l.b16 %v151
    %v188 = vunpack.c.l.b16 %v152
    %v189 = vpack.c.b16 %v174, %v173
    %v190 = vpack.c.b16 %v176, %v175
    %v191 = vpack.c.b16 %v178, %v177
    %v192 = vpack.c.b16 %v180, %v179
    %v193 = vpack.c.b16 %v182, %v181
    %v194 = vpack.c.b16 %v184, %v183
    %v195 = vpack.c.b16 %v186, %v185
    %v196 = vpack.c.b16 %v188, %v187
    %205 = vmatpush.bf16.msra.mxu0 %v196
    %206 = vmatpush.bf16.msra.mxu0 %v195
    %207 = vmatpush.bf16.msra.mxu0 %v194
    %208 = vmatpush.bf16.msra.mxu0 %v193
    %209 = vmatpush.bf16.msra.mxu0 %v192
    %210 = vmatpush.bf16.msra.mxu0 %v191
    %211 = vmatpush.bf16.msra.mxu0 %v190
    %212 = vmatpush.bf16.msra.mxu0 %v189
    %213 = vmatmul.bf16.gmra.mxu0 %v136
    %v214 = vpop.f32.mrf.mxu0
    %v215 = vadd.f32 %v155, %v214
    %v216 = vpop.f32.mrf.mxu0
    %217 = vdwg.mxu0
    %v218 = vld [vmem:[%s5] sm:$0x1]
    %v219 = vld [vmem:[%s5 + $0x1] sm:$0x1]
    %v220 = vld [vmem:[%s5 + $0x2] sm:$0x1]
    %v221 = vld [vmem:[%s5 + $0x3] sm:$0x1]
    %v222 = vperm.slane %v218, 0
    %v223 = vmul.f32 %v222, %v215
    %v224 = vtanh.pop %v223
    %v225 = vperm.slane %v219, 0
    %v226 = vmul.f32 %v225, %v224
    %v227 = vperm.slane %v220, 0
    %v228 = vadd.f32 %v226, %v227
    %v229 = vperm.slane %v221, 0
    %v230 = vmul.f32 %v229, %v215
    %v231 = vadd.f32 %v228, %v230
    %232 = vst [vmem:[#allocation11] sm:$0x3] %v231
    // Predicated region
    $region46: #{tpu_custom_call.1} parent=1 // pred_check
      _
    $region47: #{tpu_custom_call.1} parent=1 // pred_check_branch
      %234 = sbr.rel (0) target = $region49
    $region48: #{tpu_custom_call.1} parent=1 // pred_region
      %236 = vsyncadd [#allocation4], 0
      %s238 = sshll.u32 [#allocation11], 4
      %s239 = int_to_ptr.vmem [resolvable:$true] %s238
      %s240 = sshll.u32 %s6, 4
      %s241 = int_to_ptr.hbm [resolvable:$true] %s240
      %243 = dma.vmem_to_hbm [thread:$0]  %s239, 32, %s241, [#allocation4]
    $region49: #{tpu_custom_call.1} parent=1 // pred_fallthru
      _
    // Predicated region
    $region50: #{tpu_custom_call.1} parent=1 // pred_check
      _
    $region51: #{tpu_custom_call.1} parent=1 // pred_check_branch
      %245 = sbr.rel (0) target = $region53
    $region52: #{tpu_custom_call.1} parent=1 // pred_region
      %247 = dma.done [#allocation4], 32
    $region53: #{tpu_custom_call.1} parent=1 // pred_fallthru
      _
    %248 = vsyncpa [#allocation3], 1
    %249 = vsyncpa [#allocation6], 1
    %250 = vsyncpa [#allocation9], 1
    %251 = vsyncpa [#allocation4], 1

</llo_original>
